<compile_context>
chip_gen: v7x
topology: tpu7x:2x2x1
jax: 0.10.0
libtpu: 0.0.40
codegen_flags: <defaults>
</compile_context>

<pallas_src>
import functools

import jax
import jax.numpy as jnp
from jax.experimental import pallas as pl
from jax.experimental.pallas import tpu as pltpu

HID_SIZE = 64


def _round_up(n, m):
    return ((n + m - 1) // m) * m


def _cdiv(a, b):
    return (a + b - 1) // b


def _actor_mlp_kernel(x_ref, w1_ref, b1_ref, w2_ref, b2_ref, w3_ref, b3_ref,
                      o_ref, *, epi_dtype):
    """One batch tile of the 3-layer tanh MLP.

    Matmuls run on the MXU with bf16 operands and f32 accumulation; the bias-add +
    tanh epilogue runs in `epi_dtype` (bf16 on v6e/v7x, f32 on v5e and older).
    """
    def layer(a, w_ref, b_ref):
        acc = jnp.dot(a.astype(jnp.bfloat16), w_ref[...],
                      preferred_element_type=jnp.float32)
        return jnp.tanh(acc.astype(epi_dtype) + b_ref[...].astype(epi_dtype))

    h1 = layer(x_ref[...], w1_ref, b1_ref)
    h2 = layer(h1, w2_ref, b2_ref)
    mu = layer(h2, w3_ref, b3_ref)
    o_ref[...] = mu.astype(o_ref.dtype)


def _default_epilogue_dtype():
    # bf16 epilogue only where the VPU/EUP have a native bf16 path (v6e / v7x).
    try:
        kind = jax.devices()[0].device_kind.lower()
    except Exception:
        kind = ""
    return jnp.bfloat16 if ("v6" in kind or "v7" in kind) else jnp.float32


def pack_params(params):
    """One-time packing of the weights for the kernel (hoisted out of the per-call
    path): bf16 MXU operands for the weights, f32 biases (cast to the epilogue
    dtype inside the kernel — a (1, H) cast is free)."""
    return {
        "w1": params["w1"].astype(jnp.bfloat16),
        "b1": params["b1"].astype(jnp.float32),
        "w2": params["w2"].astype(jnp.bfloat16),
        "b2": params["b2"].astype(jnp.float32),
        "w3": params["w3"].astype(jnp.bfloat16),
        "b3": params["b3"].astype(jnp.float32),
    }


def actor_forward(x, packed, *, tile_b=2048, epilogue_dtype=None):
    """ModelActor.forward (the `mu` head) as a single batch-tiled Pallas kernel.

    x: (B, obs_size) float32
    packed: output of pack_params()
    returns: (B, act_size) float32
    """
    B, obs = x.shape
    H = packed["w1"].shape[1]
    act = packed["w3"].shape[1]
    if epilogue_dtype is None:
        epilogue_dtype = _default_epilogue_dtype()

    # Batch tile: multiple of 8 sublanes, capped at ceil(B/2) so a large batch
    # always yields >= 2 grid steps (keeps both TensorCores busy on v7x).  The
    # last tile may be partial; Pallas masks its out-of-bounds writes.
    TB = min(_round_up(max(tile_b, 1), 8), _round_up(_cdiv(B, 2), 8))
    grid = (_cdiv(B, TB),)

    batch_tile = lambda i: (i, 0)   # x / out move with the grid
    resident = lambda i: (0, 0)     # weights / biases stay resident in VMEM

    kernel = functools.partial(_actor_mlp_kernel, epi_dtype=epilogue_dtype)

    return pl.pallas_call(
        kernel,
        out_shape=jax.ShapeDtypeStruct((B, act), jnp.float32),
        grid=grid,
        in_specs=[
            pl.BlockSpec((TB, obs), batch_tile),   # (TB, 26): last dim = full dim
            pl.BlockSpec((obs, H), resident),      # (26, 64)
            pl.BlockSpec((1, H), resident),
            pl.BlockSpec((H, H), resident),        # (64, 64)
            pl.BlockSpec((1, H), resident),
            pl.BlockSpec((H, act), resident),      # (64, 6)
            pl.BlockSpec((1, act), resident),
        ],
        out_specs=pl.BlockSpec((TB, act), batch_tile),   # (TB, 6): no lane padding
        compiler_params=pltpu.CompilerParams(
            dimension_semantics=("parallel",)),
    )(x, packed["w1"], packed["b1"], packed["w2"], packed["b2"],
      packed["w3"], packed["b3"])


def init_params(key, obs_size, act_size):
    """Deterministic init mimicking nn.Linear default (uniform +/- 1/sqrt(fan_in))."""
    ks = jax.random.split(key, 6)

    def linear(kw, kb, fan_in, fan_out):
        bound = 1.0 / jnp.sqrt(jnp.float32(fan_in))
        w = jax.random.uniform(kw, (fan_in, fan_out), jnp.float32, -bound, bound)
        b = jax.random.uniform(kb, (1, fan_out), jnp.float32, -bound, bound)
        return w, b

    w1, b1 = linear(ks[0], ks[1], obs_size, HID_SIZE)
    w2, b2 = linear(ks[2], ks[3], HID_SIZE, HID_SIZE)
    w3, b3 = linear(ks[4], ks[5], HID_SIZE, act_size)
    # logstd parameter (zeros(act_size)) exists in the module but is not used in
    # forward(); kept here for parity.
    logstd = jnp.zeros((act_size,), jnp.float32)
    return {"w1": w1, "b1": b1, "w2": w2, "b2": b2, "w3": w3, "b3": b3,
            "logstd": logstd}


def actor_forward_ref_f32(x, p):
    h1 = jnp.tanh(x @ p["w1"] + p["b1"])
    h2 = jnp.tanh(h1 @ p["w2"] + p["b2"])
    return jnp.tanh(h2 @ p["w3"] + p["b3"])


def actor_forward_ref_mirror(x, p, epi_dtype):
    """Mirrors the kernel's numerics: bf16 MXU operands, f32 accum, epi_dtype epilogue."""
    bf = jnp.bfloat16

    def layer(a, w, b):
        acc = jnp.dot(a.astype(bf), w.astype(bf), preferred_element_type=jnp.float32)
        return jnp.tanh(acc.astype(epi_dtype) + b.astype(epi_dtype))

    h1 = layer(x, p["w1"], p["b1"])
    h2 = layer(h1, p["w2"], p["b2"])
    return layer(h2, p["w3"], p["b3"]).astype(jnp.float32)


if __name__ == "__main__":
    # HalfCheetah(PyBullet): obs_size=26, act_size=6.
    OBS_SIZE, ACT_SIZE = 26, 6

    key = jax.random.PRNGKey(0)
    kp, kx1, kx2 = jax.random.split(key, 3)
    params = init_params(kp, OBS_SIZE, ACT_SIZE)
    packed = pack_params(params)
    epi = _default_epilogue_dtype()

    # Small batch (the RL-actor use case): single grid step, no padding anywhere.
    x1 = jax.random.normal(kx1, (8, OBS_SIZE), jnp.float32)
    out1 = jax.block_until_ready(actor_forward(x1, packed, epilogue_dtype=epi))
    assert out1.shape == (8, ACT_SIZE)
    assert jnp.allclose(out1, actor_forward_ref_mirror(x1, params, epi),
                        atol=2e-2), "mismatch vs kernel-mirrored reference"
    assert jnp.allclose(out1, actor_forward_ref_f32(x1, params),
                        atol=5e-2), "mismatch vs f32 reference"

    # Larger, non-divisible batch: multiple grid steps + partial (OOB-masked) last tile.
    x2 = jax.random.normal(kx2, (200, OBS_SIZE), jnp.float32)
    out2 = jax.block_until_ready(
        actor_forward(x2, packed, tile_b=64, epilogue_dtype=epi))
    assert out2.shape == (200, ACT_SIZE)
    assert jnp.allclose(out2, actor_forward_ref_mirror(x2, params, epi),
                        atol=2e-2), "mismatch vs kernel-mirrored reference (B=200)"
    assert jnp.allclose(out2, actor_forward_ref_f32(x2, params),
                        atol=5e-2), "mismatch vs f32 reference (B=200)"

    print("KERNEL_OK")
</pallas_src>

<mosaic_0001>
module attributes {stable_mosaic.version = 11 : i64} {
  func.func @_actor_mlp_kernel(%arg0: i32, %arg1: memref<8x26xf32, #tpu.memory_space<vmem>>, %arg2: memref<26x64xbf16, #tpu.memory_space<vmem>>, %arg3: memref<1x64xf32, #tpu.memory_space<vmem>>, %arg4: memref<64x64xbf16, #tpu.memory_space<vmem>>, %arg5: memref<1x64xf32, #tpu.memory_space<vmem>>, %arg6: memref<64x6xbf16, #tpu.memory_space<vmem>>, %arg7: memref<1x6xf32, #tpu.memory_space<vmem>>, %arg8: memref<8x6xf32, #tpu.memory_space<vmem>>) attributes {dimension_semantics = [#tpu.dimension_semantics<parallel>], iteration_bounds = array<i64: 1>, scalar_prefetch = 0 : i64, scratch_operands = 0 : i64, tpu.core_type = #tpu.core_type<tc>, window_params = [{transform_indices = @transform_0, window_bounds = array<i64: 8, 26>}, {pipeline_mode = #tpu.pipeline_mode<synchronous>, transform_indices = @transform_1, window_bounds = array<i64: 26, 64>}, {pipeline_mode = #tpu.pipeline_mode<synchronous>, transform_indices = @transform_2, window_bounds = array<i64: 1, 64>}, {pipeline_mode = #tpu.pipeline_mode<synchronous>, transform_indices = @transform_3, window_bounds = array<i64: 64, 64>}, {pipeline_mode = #tpu.pipeline_mode<synchronous>, transform_indices = @transform_4, window_bounds = array<i64: 1, 64>}, {pipeline_mode = #tpu.pipeline_mode<synchronous>, transform_indices = @transform_5, window_bounds = array<i64: 64, 6>}, {pipeline_mode = #tpu.pipeline_mode<synchronous>, transform_indices = @transform_6, window_bounds = array<i64: 1, 6>}, {transform_indices = @transform_7, window_bounds = array<i64: 8, 6>}]} {
    %c0 = arith.constant 0 : index
    %c0_0 = arith.constant 0 : index
    %0 = vector.load %arg1[%c0, %c0_0] : memref<8x26xf32, #tpu.memory_space<vmem>>, vector<8x26xf32>
    %1 = arith.truncf %0 : vector<8x26xf32> to vector<8x26xbf16>
    %c0_1 = arith.constant 0 : index
    %c0_2 = arith.constant 0 : index
    %2 = vector.load %arg2[%c0_1, %c0_2] : memref<26x64xbf16, #tpu.memory_space<vmem>>, vector<26x64xbf16>
    %cst = arith.constant dense<0.000000e+00> : vector<8x64xf32>
    %3 = tpu.matmul %1, %2, %cst {dimension_numbers = #tpu.dot_dimension_numbers<[1], [0], [0], [1], [0, 0, 1, 1], [], []>} : vector<8x26xbf16>, vector<26x64xbf16>, vector<8x64xf32> -> vector<8x64xf32>
    %c0_3 = arith.constant 0 : index
    %c0_4 = arith.constant 0 : index
    %4 = vector.load %arg3[%c0_3, %c0_4] : memref<1x64xf32, #tpu.memory_space<vmem>>, vector<1x64xf32>
    %5 = vector.broadcast %4 : vector<1x64xf32> to vector<8x64xf32>
    %6 = arith.addf %3, %5 : vector<8x64xf32>
    %7 = math.tanh %6 : vector<8x64xf32>
    %8 = arith.truncf %7 : vector<8x64xf32> to vector<8x64xbf16>
    %c0_5 = arith.constant 0 : index
    %c0_6 = arith.constant 0 : index
    %9 = vector.load %arg4[%c0_5, %c0_6] : memref<64x64xbf16, #tpu.memory_space<vmem>>, vector<64x64xbf16>
    %cst_7 = arith.constant dense<0.000000e+00> : vector<8x64xf32>
    %10 = tpu.matmul %8, %9, %cst_7 {dimension_numbers = #tpu.dot_dimension_numbers<[1], [0], [0], [1], [0, 0, 1, 1], [], []>} : vector<8x64xbf16>, vector<64x64xbf16>, vector<8x64xf32> -> vector<8x64xf32>
    %c0_8 = arith.constant 0 : index
    %c0_9 = arith.constant 0 : index
    %11 = vector.load %arg5[%c0_8, %c0_9] : memref<1x64xf32, #tpu.memory_space<vmem>>, vector<1x64xf32>
    %12 = vector.broadcast %11 : vector<1x64xf32> to vector<8x64xf32>
    %13 = arith.addf %10, %12 : vector<8x64xf32>
    %14 = math.tanh %13 : vector<8x64xf32>
    %15 = arith.truncf %14 : vector<8x64xf32> to vector<8x64xbf16>
    %c0_10 = arith.constant 0 : index
    %c0_11 = arith.constant 0 : index
    %16 = vector.load %arg6[%c0_10, %c0_11] : memref<64x6xbf16, #tpu.memory_space<vmem>>, vector<64x6xbf16>
    %cst_12 = arith.constant dense<0.000000e+00> : vector<8x6xf32>
    %17 = tpu.matmul %15, %16, %cst_12 {dimension_numbers = #tpu.dot_dimension_numbers<[1], [0], [0], [1], [0, 0, 1, 1], [], []>} : vector<8x64xbf16>, vector<64x6xbf16>, vector<8x6xf32> -> vector<8x6xf32>
    %c0_13 = arith.constant 0 : index
    %c0_14 = arith.constant 0 : index
    %18 = vector.load %arg7[%c0_13, %c0_14] : memref<1x6xf32, #tpu.memory_space<vmem>>, vector<1x6xf32>
    %19 = vector.broadcast %18 : vector<1x6xf32> to vector<8x6xf32>
    %20 = arith.addf %17, %19 : vector<8x6xf32>
    %21 = math.tanh %20 : vector<8x6xf32>
    %c0_15 = arith.constant 0 : index
    %c0_16 = arith.constant 0 : index
    %22 = vector.load %arg8[%c0_15, %c0_16] : memref<8x6xf32, #tpu.memory_space<vmem>>, vector<8x6xf32>
    tpu.vector_store %arg8[%c0_15, %c0_16], %21 {strides = array<i32>} : memref<8x6xf32, #tpu.memory_space<vmem>>, vector<8x6xf32>,
    return
  }
  func.func @transform_0(%arg0: i32) -> (i32, i32) {
    %c0_i32 = arith.constant 0 : i32
    %c0_i32_0 = arith.constant 0 : i32
    return %arg0, %c0_i32 : i32, i32
  }
  func.func @transform_1(%arg0: i32) -> (i32, i32) {
    %c0_i32 = arith.constant 0 : i32
    %c0_i32_0 = arith.constant 0 : i32
    %c0_i32_1 = arith.constant 0 : i32
    return %c0_i32, %c0_i32_0 : i32, i32
  }
  func.func @transform_2(%arg0: i32) -> (i32, i32) {
    %c0_i32 = arith.constant 0 : i32
    %c0_i32_0 = arith.constant 0 : i32
    %c0_i32_1 = arith.constant 0 : i32
    return %c0_i32, %c0_i32_0 : i32, i32
  }
  func.func @transform_3(%arg0: i32) -> (i32, i32) {
    %c0_i32 = arith.constant 0 : i32
    %c0_i32_0 = arith.constant 0 : i32
    %c0_i32_1 = arith.constant 0 : i32
    return %c0_i32, %c0_i32_0 : i32, i32
  }
  func.func @transform_4(%arg0: i32) -> (i32, i32) {
    %c0_i32 = arith.constant 0 : i32
    %c0_i32_0 = arith.constant 0 : i32
    %c0_i32_1 = arith.constant 0 : i32
    return %c0_i32, %c0_i32_0 : i32, i32
  }
  func.func @transform_5(%arg0: i32) -> (i32, i32) {
    %c0_i32 = arith.constant 0 : i32
    %c0_i32_0 = arith.constant 0 : i32
    %c0_i32_1 = arith.constant 0 : i32
    return %c0_i32, %c0_i32_0 : i32, i32
  }
  func.func @transform_6(%arg0: i32) -> (i32, i32) {
    %c0_i32 = arith.constant 0 : i32
    %c0_i32_0 = arith.constant 0 : i32
    %c0_i32_1 = arith.constant 0 : i32
    return %c0_i32, %c0_i32_0 : i32, i32
  }
  func.func @transform_7(%arg0: i32) -> (i32, i32) {
    %c0_i32 = arith.constant 0 : i32
    %c0_i32_0 = arith.constant 0 : i32
    return %arg0, %c0_i32 : i32, i32
  }
}

</mosaic_0001>

<llo_original>
// kernel: tpu_custom_call.1
$region0: #{tpu_custom_call.1}
  #allocation0 [shape = 'u32[]', space=smem, size = 0x4, offset = 0x4, fixed_abs, tag = 'smem constant byte address 0x4 - core index']
  #allocation1 [shape = 'u32[144,128]{1,0:T(1,128)}', space=vmem, size = 0x12000, scoped, tag = 'internal scratch']
  %s0 = inlined_call_operand.vmem [shape: f32[8,26], index: 0, kind: input, shape index: {}]
  %s1 = inlined_call_operand.hbm [shape: bf16[26,64], index: 1, kind: input, shape index: {}]
  %s2 = inlined_call_operand.vmem [shape: f32[1,64], index: 2, kind: input, shape index: {}]
  %s3 = inlined_call_operand.vmem [shape: bf16[64,64], index: 3, kind: input, shape index: {}]
  %s4 = inlined_call_operand.vmem [shape: f32[1,64], index: 4, kind: input, shape index: {}]
  %s5 = inlined_call_operand.vmem [shape: bf16[64,6], index: 5, kind: input, shape index: {}]
  %s6 = inlined_call_operand.vmem [shape: f32[1,6], index: 6, kind: input, shape index: {}]
  %s7 = inlined_call_operand.hbm [shape: f32[8,6], index: 7, kind: output, shape index: {}]
  %s8 = sld [smem:[#allocation0]]
  $region42: #{tpu_custom_call.1} parent=0
    _
  %s10 = ssub.s32 1, %s8
  %s11 = scalar_select 0, %s10, %s8
  $region1: #{tpu_custom_call.1} parent=0
    #allocation2 [shape = 'u8[8192]{0}', space=vmem, size = 0x2000, scoped, tag = 'input window, operand 1, single buffered']
    #allocation3 [shape = 's32[1]{0}', space=sflag, size = 0x4, scoped, tag = 'scoped memory for tpu_custom_call.1']
    #allocation4 [shape = 's32[1]{0}', space=sflag, size = 0x4, scoped, tag = 'scoped memory for tpu_custom_call.1']
    #allocation5 [shape = 'u8[4096]{0}', space=vmem, size = 0x1000, scoped, tag = 'output window, operand 0, single buffered']
    %12 = vsyncpa [#allocation3], 0
    %13 = vsyncpa [#allocation4], 0
    // Predicated region
    $region2: #{tpu_custom_call.1} parent=1 // pred_check
      _
    $region3: #{tpu_custom_call.1} parent=1 // pred_check_branch
      %15 = sbr.rel (0) target = $region5
    $region4: #{tpu_custom_call.1} parent=1 // pred_region
      _
    $region5: #{tpu_custom_call.1} parent=1 // pred_fallthru
      _
    // Predicated region
    $region6: #{tpu_custom_call.1} parent=1 // pred_check
      _
    $region7: #{tpu_custom_call.1} parent=1 // pred_check_branch
      %17 = sbr.rel (0) target = $region9
    $region8: #{tpu_custom_call.1} parent=1 // pred_region
      %s19 = ssub.s32 256, 256
      %20 = vsyncadd [#allocation3], %s19
      %s21 = sshll.u32 [#allocation2], 4
      %s22 = int_to_ptr.vmem [resolvable:$true] %s21
      %27 = dma.hbm_to_vmem [thread:$0]  %s1, 256, %s22, [#allocation3], 64, 64, 4
    $region9: #{tpu_custom_call.1} parent=1 // pred_fallthru
      _
    // Predicated region
    $region10: #{tpu_custom_call.1} parent=1 // pred_check
      _
    $region11: #{tpu_custom_call.1} parent=1 // pred_check_branch
      %29 = sbr.rel (0) target = $region13
    $region12: #{tpu_custom_call.1} parent=1 // pred_region
      _
    $region13: #{tpu_custom_call.1} parent=1 // pred_fallthru
      _
    // Predicated region
    $region14: #{tpu_custom_call.1} parent=1 // pred_check
      _
    $region15: #{tpu_custom_call.1} parent=1 // pred_check_branch
      %31 = sbr.rel (0) target = $region17
    $region16: #{tpu_custom_call.1} parent=1 // pred_region
      _
    $region17: #{tpu_custom_call.1} parent=1 // pred_fallthru
      _
    // Predicated region
    $region18: #{tpu_custom_call.1} parent=1 // pred_check
      _
    $region19: #{tpu_custom_call.1} parent=1 // pred_check_branch
      %33 = sbr.rel (0) target = $region21
    $region20: #{tpu_custom_call.1} parent=1 // pred_region
      _
    $region21: #{tpu_custom_call.1} parent=1 // pred_fallthru
      _
    // Predicated region
    $region22: #{tpu_custom_call.1} parent=1 // pred_check
      _
    $region23: #{tpu_custom_call.1} parent=1 // pred_check_branch
      %35 = sbr.rel (0) target = $region25
    $region24: #{tpu_custom_call.1} parent=1 // pred_region
      _
    $region25: #{tpu_custom_call.1} parent=1 // pred_fallthru
      _
    // Predicated region
    $region26: #{tpu_custom_call.1} parent=1 // pred_check
      _
    $region27: #{tpu_custom_call.1} parent=1 // pred_check_branch
      %37 = sbr.rel (0) target = $region29
    $region28: #{tpu_custom_call.1} parent=1 // pred_region
      _
    $region29: #{tpu_custom_call.1} parent=1 // pred_fallthru
      _
    // Predicated region
    $region30: #{tpu_custom_call.1} parent=1 // pred_check
      _
    $region31: #{tpu_custom_call.1} parent=1 // pred_check_branch
      %39 = sbr.rel (0) target = $region33
    $region32: #{tpu_custom_call.1} parent=1 // pred_region
      %40 = dma.done [#allocation3], 256
    $region33: #{tpu_custom_call.1} parent=1 // pred_fallthru
      _
    %v42 = vld [vmem:[%s0] sm:$0xff]
    %v43 = vpack.c.bf16 %v42, %v42
    %v44 = vld [vmem:[#allocation2] sm:$0xf]
    %v45 = vld [vmem:[#allocation2 + $0x4] sm:$0xf]
    %v46 = vld [vmem:[#allocation2 + $0x8] sm:$0xf]
    %v47 = vld [vmem:[#allocation2 + $0xc] sm:$0x1]
    %v48 = vld [vmem:[%s2] sm:$0x1]
    %v50 = vlaneseq
    %v51 = vshrl.u32 %v50, 7
    %v52 = vsub.s32 0, %v51
    %v53 = vrot.slane %v48, %v52
    %v59 = vunpack.c.l.b16 %v44
    %v60 = vunpack.c.l.b16 %v45
    %v61 = vunpack.c.l.b16 %v46
    %v62 = vunpack.c.l.b16 %v47
    %v63 = vpack.c.b16 %v60, %v59
    %v64 = vpack.c.b16 %v62, %v61
    %vm66 = vcmask 211968
    %v68 = vsel %vm66, %v43, 0
    %vm70 = vcmask 1044480
    %v72 = vsel %vm70, %v64, 0
    %74 = vmatprep.subr.bf16.mxu0 0
    %75 = vmatpush1.bf16.msra.mxu0 %v63
    %76 = vmatprep.subr.bf16.mxu0 0
    %77 = vmatpush1.bf16.msra.mxu0 %v72
    %78 = vmatprep.subr.bf16.mxu0 0
    %79 = vmatpush1.bf16.msra.mxu0 0
    %80 = vmatprep.subr.bf16.mxu0 0
    %81 = vmatpush1.bf16.msra.mxu0 0
    %82 = vmatprep.subr.bf16.mxu0 0
    %83 = vmatpush1.bf16.msra.mxu0 0
    %84 = vmatprep.subr.bf16.mxu0 0
    %85 = vmatpush1.bf16.msra.mxu0 0
    %86 = vmatprep.subr.bf16.mxu0 0
    %87 = vmatpush1.bf16.msra.mxu0 0
    %88 = vmatprep.subr.bf16.mxu0 0
    %89 = vmatpush1.bf16.msra.mxu0 0
    %90 = vmatprep.subr.bf16.mxu0 0
    %91 = vmatpush1.bf16.msra.mxu0 0
    %92 = vmatprep.subr.bf16.mxu0 0
    %93 = vmatpush1.bf16.msra.mxu0 0
    %94 = vmatprep.subr.bf16.mxu0 0
    %95 = vmatpush1.bf16.msra.mxu0 0
    %96 = vmatprep.subr.bf16.mxu0 0
    %97 = vmatpush1.bf16.msra.mxu0 0
    %98 = vmatprep.subr.bf16.mxu0 0
    %99 = vmatpush1.bf16.msra.mxu0 0
    %100 = vmatprep.subr.bf16.mxu0 0
    %101 = vmatpush1.bf16.msra.mxu0 0
    %102 = vmatprep.subr.bf16.mxu0 0
    %103 = vmatpush1.bf16.msra.mxu0 0
    %104 = vmatprep.subr.bf16.mxu0 0
    %105 = vmatpush1.bf16.msra.mxu0 0
    %106 = vmatprep.mubr.bf16.mxu0 0
    %107 = vmatmul.mubr.bf16.gmra.mrb[0].mxu0 %v68
    %v108 = vpop.f32.mrb[0].mxu0
    %v109 = vadd.f32 %v53, %v108
    %v110 = vpop.f32.mrb[0].mxu0
    %v111 = vpop.f32.mrb[0].mxu0
    %v112 = vpop.f32.mrb[0].mxu0
    %113 = vdwg.mxu0
    %v114 = vtanh.pop %v109
    %v115 = vpack.c.bf16 %v114, %v114
    %v116 = vld [vmem:[%s3] sm:$0xf]
    %v117 = vld [vmem:[%s3 + $0x4] sm:$0xf]
    %v118 = vld [vmem:[%s3 + $0x8] sm:$0xf]
    %v119 = vld [vmem:[%s3 + $0xc] sm:$0xf]
    %v120 = vld [vmem:[%s3 + $0x10] sm:$0xf]
    %v121 = vld [vmem:[%s3 + $0x14] sm:$0xf]
    %v122 = vld [vmem:[%s3 + $0x18] sm:$0xf]
    %v123 = vld [vmem:[%s3 + $0x1c] sm:$0xf]
    %v124 = vld [vmem:[%s4] sm:$0x1]
    %v126 = vlaneseq
    %v127 = vshrl.u32 %v126, 7
    %v128 = vsub.s32 0, %v127
    %v129 = vrot.slane %v124, %v128
    %v139 = vunpack.c.l.b16 %v116
    %v140 = vunpack.c.l.b16 %v117
    %v141 = vunpack.c.l.b16 %v118
    %v142 = vunpack.c.l.b16 %v119
    %v143 = vunpack.c.l.b16 %v120
    %v144 = vunpack.c.l.b16 %v121
    %v145 = vunpack.c.l.b16 %v122
    %v146 = vunpack.c.l.b16 %v123
    %v147 = vpack.c.b16 %v140, %v139
    %v148 = vpack.c.b16 %v142, %v141
    %v149 = vpack.c.b16 %v144, %v143
    %v150 = vpack.c.b16 %v146, %v145
    %vm155 = vcmask 523264
    %v157 = vsel %vm155, %v115, 0
    %159 = vmatprep.subr.bf16.mxu0 0
    %160 = vmatpush1.bf16.msra.mxu0 %v147
    %161 = vmatprep.subr.bf16.mxu0 0
    %162 = vmatpush1.bf16.msra.mxu0 %v148
    %163 = vmatprep.subr.bf16.mxu0 0
    %164 = vmatpush1.bf16.msra.mxu0 %v149
    %165 = vmatprep.subr.bf16.mxu0 0
    %166 = vmatpush1.bf16.msra.mxu0 %v150
    %167 = vmatprep.subr.bf16.mxu0 0
    %168 = vmatpush1.bf16.msra.mxu0 0
    %169 = vmatprep.subr.bf16.mxu0 0
    %170 = vmatpush1.bf16.msra.mxu0 0
    %171 = vmatprep.subr.bf16.mxu0 0
    %172 = vmatpush1.bf16.msra.mxu0 0
    %173 = vmatprep.subr.bf16.mxu0 0
    %174 = vmatpush1.bf16.msra.mxu0 0
    %175 = vmatprep.subr.bf16.mxu0 0
    %176 = vmatpush1.bf16.msra.mxu0 0
    %177 = vmatprep.subr.bf16.mxu0 0
    %178 = vmatpush1.bf16.msra.mxu0 0
    %179 = vmatprep.subr.bf16.mxu0 0
    %180 = vmatpush1.bf16.msra.mxu0 0
    %181 = vmatprep.subr.bf16.mxu0 0
    %182 = vmatpush1.bf16.msra.mxu0 0
    %183 = vmatprep.subr.bf16.mxu0 0
    %184 = vmatpush1.bf16.msra.mxu0 0
    %185 = vmatprep.subr.bf16.mxu0 0
    %186 = vmatpush1.bf16.msra.mxu0 0
    %187 = vmatprep.subr.bf16.mxu0 0
    %188 = vmatpush1.bf16.msra.mxu0 0
    %189 = vmatprep.subr.bf16.mxu0 0
    %190 = vmatpush1.bf16.msra.mxu0 0
    %191 = vmatprep.mubr.bf16.mxu0 0
    %192 = vmatmul.mubr.bf16.gmra.mrb[0].mxu0 %v157
    %v193 = vpop.f32.mrb[0].mxu0
    %v194 = vadd.f32 %v129, %v193
    %v195 = vpop.f32.mrb[0].mxu0
    %v196 = vpop.f32.mrb[0].mxu0
    %v197 = vpop.f32.mrb[0].mxu0
    %198 = vdwg.mxu0
    %v199 = vtanh.pop %v194
    %v200 = vpack.c.bf16 %v199, %v199
    %v201 = vld [vmem:[%s5] sm:$0xf]
    %v202 = vld [vmem:[%s5 + $0x4] sm:$0xf]
    %v203 = vld [vmem:[%s5 + $0x8] sm:$0xf]
    %v204 = vld [vmem:[%s5 + $0xc] sm:$0xf]
    %v205 = vld [vmem:[%s5 + $0x10] sm:$0xf]
    %v206 = vld [vmem:[%s5 + $0x14] sm:$0xf]
    %v207 = vld [vmem:[%s5 + $0x18] sm:$0xf]
    %v208 = vld [vmem:[%s5 + $0x1c] sm:$0xf]
    %v209 = vld [vmem:[%s6] sm:$0x1]
    %v211 = vlaneseq
    %v212 = vshrl.u32 %v211, 7
    %v213 = vsub.s32 0, %v212
    %v214 = vrot.slane %v209, %v213
    %v224 = vunpack.c.l.b16 %v201
    %v225 = vunpack.c.l.b16 %v202
    %v226 = vunpack.c.l.b16 %v203
    %v227 = vunpack.c.l.b16 %v204
    %v228 = vunpack.c.l.b16 %v205
    %v229 = vunpack.c.l.b16 %v206
    %v230 = vunpack.c.l.b16 %v207
    %v231 = vunpack.c.l.b16 %v208
    %v232 = vpack.c.b16 %v225, %v224
    %v233 = vpack.c.b16 %v227, %v226
    %v234 = vpack.c.b16 %v229, %v228
    %v235 = vpack.c.b16 %v231, %v230
    %v241 = vsel %vm155, %v200, 0
    %243 = vmatprep.subr.bf16.mxu0 0
    %244 = vmatpush1.bf16.msra.mxu0 %v232
    %245 = vmatprep.subr.bf16.mxu0 0
    %246 = vmatpush1.bf16.msra.mxu0 %v233
    %247 = vmatprep.subr.bf16.mxu0 0
    %248 = vmatpush1.bf16.msra.mxu0 %v234
    %249 = vmatprep.subr.bf16.mxu0 0
    %250 = vmatpush1.bf16.msra.mxu0 %v235
    %251 = vmatprep.subr.bf16.mxu0 0
    %252 = vmatpush1.bf16.msra.mxu0 0
    %253 = vmatprep.subr.bf16.mxu0 0
    %254 = vmatpush1.bf16.msra.mxu0 0
    %255 = vmatprep.subr.bf16.mxu0 0
    %256 = vmatpush1.bf16.msra.mxu0 0
    %257 = vmatprep.subr.bf16.mxu0 0
    %258 = vmatpush1.bf16.msra.mxu0 0
    %259 = vmatprep.subr.bf16.mxu0 0
    %260 = vmatpush1.bf16.msra.mxu0 0
    %261 = vmatprep.subr.bf16.mxu0 0
    %262 = vmatpush1.bf16.msra.mxu0 0
    %263 = vmatprep.subr.bf16.mxu0 0
    %264 = vmatpush1.bf16.msra.mxu0 0
    %265 = vmatprep.subr.bf16.mxu0 0
    %266 = vmatpush1.bf16.msra.mxu0 0
    %267 = vmatprep.subr.bf16.mxu0 0
    %268 = vmatpush1.bf16.msra.mxu0 0
    %269 = vmatprep.subr.bf16.mxu0 0
    %270 = vmatpush1.bf16.msra.mxu0 0
    %271 = vmatprep.subr.bf16.mxu0 0
    %272 = vmatpush1.bf16.msra.mxu0 0
    %273 = vmatprep.subr.bf16.mxu0 0
    %274 = vmatpush1.bf16.msra.mxu0 0
    %275 = vmatprep.mubr.bf16.mxu0 0
    %276 = vmatmul.mubr.bf16.gmra.mrb[0].mxu0 %v241
    %v277 = vpop.f32.mrb[0].mxu0
    %v278 = vadd.f32 %v214, %v277
    %v279 = vpop.f32.mrb[0].mxu0
    %v280 = vpop.f32.mrb[0].mxu0
    %v281 = vpop.f32.mrb[0].mxu0
    %282 = vdwg.mxu0
    %v283 = vtanh.pop %v278
    %vm284 = vcmask 48128
    %285 = vst.msk [vmem:[#allocation5] sm:$0xff] %vm284, %v283
    // Predicated region
    $region34: #{tpu_custom_call.1} parent=1 // pred_check
      _
    $region35: #{tpu_custom_call.1} parent=1 // pred_check_branch
      %287 = sbr.rel (0) target = $region37
    $region36: #{tpu_custom_call.1} parent=1 // pred_region
      %s289 = ssub.s32 128, 128
      %290 = vsyncadd [#allocation4], %s289
      %s292 = sshll.u32 [#allocation5], 4
      %s293 = int_to_ptr.vmem [resolvable:$true] %s292
      %295 = dma.vmem_to_hbm [thread:$0]  %s293, 128, %s7, [#allocation4]
    $region37: #{tpu_custom_call.1} parent=1 // pred_fallthru
      _
    // Predicated region
    $region38: #{tpu_custom_call.1} parent=1 // pred_check
      _
    $region39: #{tpu_custom_call.1} parent=1 // pred_check_branch
      %297 = sbr.rel (0) target = $region41
    $region40: #{tpu_custom_call.1} parent=1 // pred_region
      %298 = dma.done [#allocation4], 128
    $region41: #{tpu_custom_call.1} parent=1 // pred_fallthru
      _
    %299 = vsyncpa [#allocation3], 1
    %300 = vsyncpa [#allocation4], 1

</llo_original>
